<compile_context>
chip_gen: v7x
topology: tpu7x:2x2x1
jax: 0.10.0
libtpu: 0.0.40
codegen_flags: <defaults>
</compile_context>

<pallas_src>
import jax
import jax.numpy as jnp
from jax.experimental import pallas as pl
from jax.experimental.pallas import tpu as pltpu

LANE = 128  # vreg lane width; last dim of every block is lane-dense.


def _scale_kernel(scale_ref, x_ref, o_ref):
    # scale_ref: SMEM (1,) float32 scalar; x_ref / o_ref: (block_rows, 128)
    # VMEM tiles.  Multiply in (at least) f32, cast only the result.
    o_ref[...] = (x_ref[...] * scale_ref[0]).astype(o_ref.dtype)


def _round_up(a, b):
    return (a + b - 1) // b * b


def _sublane_rows(dtype):
    # Sub-32-bit dtypes pack along sublanes: f32 -> 8, bf16 -> 16, int8/fp8 -> 32.
    itemsize = jnp.dtype(dtype).itemsize
    return max(8, 32 // itemsize)


def _block_bytes_for_device():
    # ~4 MiB blocks on v6e / v7x (32 MiB scoped VMEM default), ~2 MiB otherwise
    # (v5e's 16 MiB scoped default would OOM at 4 MiB double-buffered in+out).
    try:
        kind = jax.devices()[0].device_kind.lower()
    except Exception:
        kind = ""
    if ("v6" in kind) or ("v7" in kind) or ("7x" in kind):
        return 4 << 20
    return 2 << 20


def scale_forward(x, scale, *, donate_input=False):
    """y = x * scale, matching torch `Scale.forward` (scale is a (1,) f32 param)."""
    orig_shape = x.shape
    dtype = x.dtype
    total = x.size
    if total == 0:
        return x

    itemsize = jnp.dtype(dtype).itemsize
    sub = _sublane_rows(dtype)
    block_bytes = _block_bytes_for_device()
    max_block_rows = max(sub, (block_bytes // (LANE * itemsize)) // sub * sub)

    x_flat = x.reshape(-1)
    pad = (-total) % LANE
    if pad:
        # Rare path: numel not a multiple of 128.  Pads only the <128-element
        # tail, but jnp.pad / the final slice still materialize full copies.
        # TODO(synk): use a 1-D block view to make the unaligned case zero-copy.
        x_flat = jnp.pad(x_flat, (0, pad))
    rows = x_flat.size // LANE

    # Block rows: sublane-aligned, capped at ~block_bytes per block.  No
    # rounding of `rows` itself -- Pallas masks the ragged last block.
    block_rows = min(max_block_rows, _round_up(rows, sub))
    grid = pl.cdiv(rows, block_rows)

    x2 = x_flat.reshape(rows, LANE)

    extra = {}
    if donate_input:
        # Alias the data operand (index 1) onto the output: halves the HBM
        # working set when the caller actually donates x.
        extra["input_output_aliases"] = {1: 0}

    out2 = pl.pallas_call(
        _scale_kernel,
        out_shape=jax.ShapeDtypeStruct((rows, LANE), dtype),
        grid=(grid,),
        in_specs=[
            pl.BlockSpec(memory_space=pltpu.MemorySpace.SMEM),   # f32 scalar
            pl.BlockSpec((block_rows, LANE), lambda i: (i, 0)),  # data tile
        ],
        out_specs=pl.BlockSpec((block_rows, LANE), lambda i: (i, 0)),
        compiler_params=pltpu.CompilerParams(
            dimension_semantics=("parallel",)),
        **extra,
    )(scale.astype(jnp.float32), x2)

    out_flat = out2.reshape(-1)
    if pad:
        out_flat = out_flat[:total]
    return out_flat.reshape(orig_shape)


if __name__ == "__main__":
    key = jax.random.PRNGKey(0)
    # PyTorch-style NCHW batch; the Scale module itself is shape-agnostic.
    x = jax.random.normal(key, (2, 4, 16, 16), jnp.float32)
    scale = jnp.array([0.001], jnp.float32)  # module default init_value=0.001

    out = jax.block_until_ready(scale_forward(x, scale))
    assert out.shape == x.shape and out.dtype == x.dtype

    ref = x * scale[0]
    err = float(jnp.max(jnp.abs(out - ref)))
    assert err < 1e-6, f"max abs error too large: {err}"

    print("KERNEL_OK")
</pallas_src>

<mosaic_0001>
module attributes {stable_mosaic.version = 11 : i64} {
  func.func @_scale_kernel(%arg0: i32, %arg1: memref<1xf32, #tpu.memory_space<smem>>, %arg2: memref<16x128xf32, #tpu.memory_space<vmem>>, %arg3: memref<16x128xf32, #tpu.memory_space<vmem>>) attributes {dimension_semantics = [#tpu.dimension_semantics<parallel>], iteration_bounds = array<i64: 1>, scalar_prefetch = 0 : i64, scratch_operands = 0 : i64, tpu.core_type = #tpu.core_type<tc>, window_params = [{transform_indices = @transform_0, window_bounds = array<i64: 1>}, {transform_indices = @transform_1, window_bounds = array<i64: 16, 128>}, {transform_indices = @transform_2, window_bounds = array<i64: 16, 128>}]} {
    %c0 = arith.constant 0 : index
    %c0_0 = arith.constant 0 : index
    %0 = vector.load %arg2[%c0, %c0_0] : memref<16x128xf32, #tpu.memory_space<vmem>>, vector<16x128xf32>
    %c0_1 = arith.constant 0 : index
    %1 = memref.load %arg1[%c0_1] : memref<1xf32, #tpu.memory_space<smem>>
    %2 = vector.broadcast %1 : f32 to vector<16x128xf32>
    %3 = arith.mulf %0, %2 : vector<16x128xf32>
    %c0_2 = arith.constant 0 : index
    %c0_3 = arith.constant 0 : index
    %4 = vector.load %arg3[%c0_2, %c0_3] : memref<16x128xf32, #tpu.memory_space<vmem>>, vector<16x128xf32>
    tpu.vector_store %arg3[%c0_2, %c0_3], %3 {strides = array<i32>} : memref<16x128xf32, #tpu.memory_space<vmem>>, vector<16x128xf32>,
    return
  }
  func.func @transform_0(%arg0: i32) -> i32 {
    %c0_i32 = arith.constant 0 : i32
    %c0_i32_0 = arith.constant 0 : i32
    return %c0_i32 : i32
  }
  func.func @transform_1(%arg0: i32) -> (i32, i32) {
    %c0_i32 = arith.constant 0 : i32
    %c0_i32_0 = arith.constant 0 : i32
    return %arg0, %c0_i32 : i32, i32
  }
  func.func @transform_2(%arg0: i32) -> (i32, i32) {
    %c0_i32 = arith.constant 0 : i32
    %c0_i32_0 = arith.constant 0 : i32
    return %arg0, %c0_i32 : i32, i32
  }
}

</mosaic_0001>

<llo_original>
// kernel: tpu_custom_call.1
$region0: #{tpu_custom_call.1}
  #allocation0 [shape = 'u32[]', space=smem, size = 0x4, offset = 0x4, fixed_abs, tag = 'smem constant byte address 0x4 - core index']
  #allocation1 [shape = 'u32[144,128]{1,0:T(1,128)}', space=vmem, size = 0x12000, scoped, tag = 'internal scratch']
  #allocation2 [shape = 'f32[1]{0:T(128)S(6)}', space=smem, size = 0x200, scoped, tag = 'scoped memory for tpu_custom_call.1']
  %s0 = inlined_call_operand.<no memory space> [shape: f32[1], index: 0, kind: input, shape index: {}]
  %s1 = inlined_call_operand.hbm [shape: f32[16,128], index: 1, kind: input, shape index: {}]
  %s2 = inlined_call_operand.hbm [shape: f32[16,128], index: 2, kind: output, shape index: {}]
  %s3 = sld [smem:[#allocation0]]
  $region22: #{tpu_custom_call.1} parent=0
    _
  %s5 = ssub.s32 1, %s3
  %s6 = scalar_select 0, %s5, %s3
  %7 = sst [smem:[#allocation2]] %s0
  $region1: #{tpu_custom_call.1} parent=0
    #allocation3 [shape = 'u8[8192]{0}', space=vmem, size = 0x2000, scoped, tag = 'input window, operand 1, single buffered']
    #allocation4 [shape = 's32[1]{0}', space=sflag, size = 0x4, scoped, tag = 'scoped memory for tpu_custom_call.1']
    #allocation5 [shape = 's32[1]{0}', space=sflag, size = 0x4, scoped, tag = 'scoped memory for tpu_custom_call.1']
    #allocation6 [shape = 'u8[8192]{0}', space=vmem, size = 0x2000, scoped, tag = 'output window, operand 0, single buffered']
    %8 = vsyncpa [#allocation4], 0
    %9 = vsyncpa [#allocation5], 0
    // Predicated region
    $region2: #{tpu_custom_call.1} parent=1 // pred_check
      _
    $region3: #{tpu_custom_call.1} parent=1 // pred_check_branch
      %11 = sbr.rel (0) target = $region5
    $region4: #{tpu_custom_call.1} parent=1 // pred_region
      _
    $region5: #{tpu_custom_call.1} parent=1 // pred_fallthru
      _
    // Predicated region
    $region6: #{tpu_custom_call.1} parent=1 // pred_check
      _
    $region7: #{tpu_custom_call.1} parent=1 // pred_check_branch
      %13 = sbr.rel (0) target = $region9
    $region8: #{tpu_custom_call.1} parent=1 // pred_region
      %s15 = ssub.s32 256, 256
      %16 = vsyncadd [#allocation4], %s15
      %s17 = sshll.u32 [#allocation3], 4
      %s18 = int_to_ptr.vmem [resolvable:$true] %s17
      %23 = dma.hbm_to_vmem [thread:$0]  %s1, 256, %s18, [#allocation4], 128, 128, 8
    $region9: #{tpu_custom_call.1} parent=1 // pred_fallthru
      _
    // Predicated region
    $region10: #{tpu_custom_call.1} parent=1 // pred_check
      _
    $region11: #{tpu_custom_call.1} parent=1 // pred_check_branch
      %25 = sbr.rel (0) target = $region13
    $region12: #{tpu_custom_call.1} parent=1 // pred_region
      %26 = dma.done [#allocation4], 256
    $region13: #{tpu_custom_call.1} parent=1 // pred_fallthru
      _
    %v27 = vld [vmem:[#allocation3] sm:$0xff]
    %v28 = vld [vmem:[#allocation3 + $0x8] sm:$0xff]
    %s29 = sld [smem:[#allocation2]]
    %v30 = vstv %s29
    %v31 = vmul.f32 %v27, %v30
    %v32 = vmul.f32 %v28, %v30
    %33 = vst [vmem:[#allocation6] sm:$0xff] %v31
    %34 = vst [vmem:[#allocation6 + $0x8] sm:$0xff] %v32
    // Predicated region
    $region14: #{tpu_custom_call.1} parent=1 // pred_check
      _
    $region15: #{tpu_custom_call.1} parent=1 // pred_check_branch
      %36 = sbr.rel (0) target = $region17
    $region16: #{tpu_custom_call.1} parent=1 // pred_region
      %s38 = ssub.s32 256, 256
      %39 = vsyncadd [#allocation5], %s38
      %s40 = sshll.u32 [#allocation6], 4
      %s41 = int_to_ptr.vmem [resolvable:$true] %s40
      %46 = dma.vmem_to_hbm [thread:$0]  %s41, 256, %s2, [#allocation5], 128, 128, 8
    $region17: #{tpu_custom_call.1} parent=1 // pred_fallthru
      _
    // Predicated region
    $region18: #{tpu_custom_call.1} parent=1 // pred_check
      _
    $region19: #{tpu_custom_call.1} parent=1 // pred_check_branch
      %48 = sbr.rel (0) target = $region21
    $region20: #{tpu_custom_call.1} parent=1 // pred_region
      %49 = dma.done [#allocation5], 256
    $region21: #{tpu_custom_call.1} parent=1 // pred_fallthru
      _
    %50 = vsyncpa [#allocation4], 1
    %51 = vsyncpa [#allocation5], 1

</llo_original>
